<compile_context>
chip_gen: v6e
topology: v6e:2x2x1
jax: 0.10.0
libtpu: 0.0.40
codegen_flags: <defaults>
</compile_context>

<pallas_src>
import functools

import jax
import jax.numpy as jnp
from jax.experimental import pallas as pl
from jax.experimental.pallas import tpu as pltpu


def _round_up(a, b):
    return ((a + b - 1) // b) * b


def dnn_kernel(x_ref, w1t_ref, b1_ref, w2t_ref, b2_ref, o_ref):
    """One lane-tile of nodes: fc1 -> ReLU -> (dropout=identity) -> fc2 -> log_softmax.

    x_ref   : [tile_n, F]  natural node-major layout (f32)
    w1t_ref : [H, F]       fc1 weight, transposed
    b1_ref  : [H, 1]       fc1 bias (column vector, broadcasts over lanes)
    w2t_ref : [C, H]       fc2 weight, transposed
    b2_ref  : [C, 1]       fc2 bias
    o_ref   : [C, tile_n]  lane-dense log-probabilities
    """
    # fc1: h[H, T] = W1^T[H, F] . x[T, F]^T  -- the X-tile transpose is expressed via
    # the contraction dims (no wrapper-side transpose pass); f32 MXU, f32 accumulate.
    h = jax.lax.dot_general(
        w1t_ref[...], x_ref[...],
        dimension_numbers=(((1,), (1,)), ((), ())),
        preferred_element_type=jnp.float32)
    h = jnp.maximum(h + b1_ref[...], 0.0)          # bias + ReLU (VPU, f32)
    # Dropout: module is evaluated with training=False -> identity.
    # TODO(synk): training-mode dropout would need pltpu.prng_seed/prng_random_bits.
    # fc2: [C, H] . [H, T] -> [C, T]
    logits = jnp.dot(w2t_ref[...], h,
                     preferred_element_type=jnp.float32) + b2_ref[...]
    # log_softmax over the class axis (the sublane axis here), all f32.
    m = jnp.max(logits, axis=0, keepdims=True)
    shifted = logits - m
    lse = jnp.log(jnp.sum(jnp.exp(shifted), axis=0, keepdims=True))
    o_ref[...] = (shifted - lse).astype(o_ref.dtype)


def _choose_tile(n, tile_n):
    """Lane-tile (multiple of 128) for the node axis."""
    n128 = _round_up(n, 128)
    if n128 < 1024:
        return n128                              # too small to be worth splitting
    # Aim for >= 2 grid steps so ("parallel",) shards across v7x's two TensorCores,
    # but never exceed tile_n (VMEM / per-step-overhead budget).
    return min(tile_n, _round_up((n128 + 1) // 2, 128))


@functools.partial(jax.jit, static_argnames=("tile_n", "transpose_output"))
def dnn_forward(x, w1, b1, w2, b2, *, tile_n=16384, transpose_output=True):
    """x: [N, F_in]; w1: [F_in, H]; b1: [1, H]; w2: [H, C]; b2: [1, C].

    Returns [N, C] log-probs (module layout) or, with transpose_output=False,
    the lane-dense [C, N] result (no extra HBM transpose pass).
    """
    n, f_in = x.shape
    hidden = w1.shape[1]
    n_cls = w2.shape[1]

    tile = _choose_tile(n, tile_n)
    grid = (pl.cdiv(n, tile),)

    # Tiny parameter re-layouts (a few KiB; negligible wrapper cost).
    w1t = w1.T.astype(jnp.float32)                 # [H, F]
    w2t = w2.T.astype(jnp.float32)                 # [C, H]
    b1c = b1.reshape(hidden, 1).astype(jnp.float32)
    b2c = b2.reshape(n_cls, 1).astype(jnp.float32)

    out_t = pl.pallas_call(
        dnn_kernel,
        out_shape=jax.ShapeDtypeStruct((n_cls, n), jnp.float32),
        grid_spec=pltpu.PrefetchScalarGridSpec(
            num_scalar_prefetch=0,
            grid=grid,
            in_specs=[
                pl.BlockSpec((tile, f_in), lambda i: (i, 0)),      # x, natural layout
                pl.BlockSpec((hidden, f_in), lambda i: (0, 0)),    # W1^T (constant block)
                pl.BlockSpec((hidden, 1), lambda i: (0, 0)),       # b1
                pl.BlockSpec((n_cls, hidden), lambda i: (0, 0)),   # W2^T (constant block)
                pl.BlockSpec((n_cls, 1), lambda i: (0, 0)),        # b2
            ],
            out_specs=pl.BlockSpec((n_cls, tile), lambda i: (0, i)),  # lane-dense store
        ),
        compiler_params=pltpu.CompilerParams(
            dimension_semantics=("parallel",),
            # Covers v5e's 16 MiB scoped default; at tile=16384 the kernel needs
            # ~25 MiB (lane-padded x windows dominate). Well under v7x's 64 MiB physical.
            vmem_limit_bytes=40 * 1024 * 1024,
        ),
    )(x.astype(jnp.float32), w1t, b1c, w2t, b2c)

    if transpose_output:
        return out_t.T          # [N, C] module-compatible layout
    return out_t                # [C, N] lane-dense layout (preferred for TPU consumers)


def reference_forward_f32(x, w1, b1, w2, b2):
    h = jnp.maximum(x @ w1 + b1, 0.0)
    logits = h @ w2 + b2
    return jax.nn.log_softmax(logits, axis=1)


if __name__ == "__main__":
    # Small synthetic config consistent with the module:
    #   num_node_features=16, dim_size (hidden)=32, num_classes=8.
    # num_nodes deliberately NOT a multiple of 128 to exercise the ragged-block path.
    num_nodes = 200
    num_node_features = 16
    dim_size = 32
    num_classes = 8

    key = jax.random.PRNGKey(0)
    kx, kw1, kb1, kw2, kb2, ke = jax.random.split(key, 6)

    x = jax.random.normal(kx, (num_nodes, num_node_features), jnp.float32)
    # edge_index (unused by the DNN forward, kept for interface fidelity)
    edge_index = jax.random.randint(ke, (2, 256), 0, num_nodes, jnp.int32)

    # Parameters stored [in, out] (transpose of torch Linear.weight).
    w1 = jax.random.normal(kw1, (num_node_features, dim_size), jnp.float32) * 0.1
    b1 = jax.random.normal(kb1, (1, dim_size), jnp.float32) * 0.1
    w2 = jax.random.normal(kw2, (dim_size, num_classes), jnp.float32) * 0.1
    b2 = jax.random.normal(kb2, (1, num_classes), jnp.float32) * 0.1

    out = dnn_forward(x, w1, b1, w2, b2)
    out = jax.block_until_ready(out)
    assert out.shape == (num_nodes, num_classes)

    ref = reference_forward_f32(x, w1, b1, w2, b2)
    assert jnp.allclose(out, ref, atol=1e-2, rtol=1e-2), "mismatch vs f32 reference"

    # Lane-dense output path (no wrapper transpose): same values, [C, N] layout.
    out_cn = jax.block_until_ready(
        dnn_forward(x, w1, b1, w2, b2, transpose_output=False))
    assert out_cn.shape == (num_classes, num_nodes)
    assert jnp.allclose(out_cn.T, ref, atol=1e-2, rtol=1e-2), "mismatch (lane-dense path)"

    print("KERNEL_OK")
</pallas_src>

<mosaic_0001>
module attributes {stable_mosaic.version = 11 : i64} {
  func.func @dnn_kernel(%arg0: i32, %arg1: memref<256x16xf32, #tpu.memory_space<vmem>>, %arg2: memref<32x16xf32, #tpu.memory_space<vmem>>, %arg3: memref<32x1xf32, #tpu.memory_space<vmem>>, %arg4: memref<8x32xf32, #tpu.memory_space<vmem>>, %arg5: memref<8x1xf32, #tpu.memory_space<vmem>>, %arg6: memref<8x256xf32, #tpu.memory_space<vmem>>) attributes {dimension_semantics = [#tpu.dimension_semantics<parallel>], iteration_bounds = array<i64: 1>, scalar_prefetch = 0 : i64, scratch_operands = 0 : i64, tpu.core_type = #tpu.core_type<tc>, window_params = [{transform_indices = @transform_0, window_bounds = array<i64: 256, 16>}, {pipeline_mode = #tpu.pipeline_mode<synchronous>, transform_indices = @transform_1, window_bounds = array<i64: 32, 16>}, {pipeline_mode = #tpu.pipeline_mode<synchronous>, transform_indices = @transform_2, window_bounds = array<i64: 32, 1>}, {pipeline_mode = #tpu.pipeline_mode<synchronous>, transform_indices = @transform_3, window_bounds = array<i64: 8, 32>}, {pipeline_mode = #tpu.pipeline_mode<synchronous>, transform_indices = @transform_4, window_bounds = array<i64: 8, 1>}, {transform_indices = @transform_5, window_bounds = array<i64: 8, 256>}]} {
    %c0 = arith.constant 0 : index
    %c0_0 = arith.constant 0 : index
    %0 = vector.load %arg2[%c0, %c0_0] : memref<32x16xf32, #tpu.memory_space<vmem>>, vector<32x16xf32>
    %c0_1 = arith.constant 0 : index
    %c0_2 = arith.constant 0 : index
    %1 = vector.load %arg1[%c0_1, %c0_2] : memref<256x16xf32, #tpu.memory_space<vmem>>, vector<256x16xf32>
    %cst = arith.constant dense<0.000000e+00> : vector<32x256xf32>
    %2 = tpu.matmul %0, %1, %cst {dimension_numbers = #tpu.dot_dimension_numbers<[1], [1], [0], [0], [0, 0, 1, 0], [], []>} : vector<32x16xf32>, vector<256x16xf32>, vector<32x256xf32> -> vector<32x256xf32>
    %c0_3 = arith.constant 0 : index
    %c0_4 = arith.constant 0 : index
    %3 = vector.load %arg3[%c0_3, %c0_4] : memref<32x1xf32, #tpu.memory_space<vmem>>, vector<32x1xf32>
    %4 = vector.broadcast %3 : vector<32x1xf32> to vector<32x256xf32>
    %5 = arith.addf %2, %4 : vector<32x256xf32>
    %cst_5 = arith.constant 0.000000e+00 : f32
    %6 = vector.broadcast %cst_5 : f32 to vector<32x256xf32>
    %7 = arith.maximumf %5, %6 : vector<32x256xf32>
    %c0_6 = arith.constant 0 : index
    %c0_7 = arith.constant 0 : index
    %8 = vector.load %arg4[%c0_6, %c0_7] : memref<8x32xf32, #tpu.memory_space<vmem>>, vector<8x32xf32>
    %cst_8 = arith.constant dense<0.000000e+00> : vector<8x256xf32>
    %9 = tpu.matmul %8, %7, %cst_8 {dimension_numbers = #tpu.dot_dimension_numbers<[1], [0], [0], [1], [0, 0, 1, 1], [], []>} : vector<8x32xf32>, vector<32x256xf32>, vector<8x256xf32> -> vector<8x256xf32>
    %c0_9 = arith.constant 0 : index
    %c0_10 = arith.constant 0 : index
    %10 = vector.load %arg5[%c0_9, %c0_10] : memref<8x1xf32, #tpu.memory_space<vmem>>, vector<8x1xf32>
    %11 = vector.broadcast %10 : vector<8x1xf32> to vector<8x256xf32>
    %12 = arith.addf %9, %11 : vector<8x256xf32>
    %cst_11 = arith.constant dense<0xFF800000> : vector<256xf32>
    %13 = vector.multi_reduction <maximumf>, %12, %cst_11 [0] : vector<8x256xf32> to vector<256xf32>
    %14 = vector.shape_cast %13 : vector<256xf32> to vector<1x256xf32>
    %15 = vector.broadcast %14 : vector<1x256xf32> to vector<8x256xf32>
    %16 = arith.subf %12, %15 : vector<8x256xf32>
    %17 = math.exp %16 : vector<8x256xf32>
    %cst_12 = arith.constant dense<0.000000e+00> : vector<256xf32>
    %18 = vector.multi_reduction <add>, %17, %cst_12 [0] : vector<8x256xf32> to vector<256xf32>
    %19 = vector.shape_cast %18 : vector<256xf32> to vector<1x256xf32>
    %20 = math.log %19 : vector<1x256xf32>
    %21 = vector.broadcast %20 : vector<1x256xf32> to vector<8x256xf32>
    %22 = arith.subf %16, %21 : vector<8x256xf32>
    %c0_13 = arith.constant 0 : index
    %c0_14 = arith.constant 0 : index
    %23 = vector.load %arg6[%c0_13, %c0_14] : memref<8x256xf32, #tpu.memory_space<vmem>>, vector<8x256xf32>
    tpu.vector_store %arg6[%c0_13, %c0_14], %22 {strides = array<i32>} : memref<8x256xf32, #tpu.memory_space<vmem>>, vector<8x256xf32>,
    return
  }
  func.func @transform_0(%arg0: i32) -> (i32, i32) {
    %c0_i32 = arith.constant 0 : i32
    %c0_i32_0 = arith.constant 0 : i32
    return %arg0, %c0_i32 : i32, i32
  }
  func.func @transform_1(%arg0: i32) -> (i32, i32) {
    %c0_i32 = arith.constant 0 : i32
    %c0_i32_0 = arith.constant 0 : i32
    %c0_i32_1 = arith.constant 0 : i32
    return %c0_i32, %c0_i32_0 : i32, i32
  }
  func.func @transform_2(%arg0: i32) -> (i32, i32) {
    %c0_i32 = arith.constant 0 : i32
    %c0_i32_0 = arith.constant 0 : i32
    %c0_i32_1 = arith.constant 0 : i32
    return %c0_i32, %c0_i32_0 : i32, i32
  }
  func.func @transform_3(%arg0: i32) -> (i32, i32) {
    %c0_i32 = arith.constant 0 : i32
    %c0_i32_0 = arith.constant 0 : i32
    %c0_i32_1 = arith.constant 0 : i32
    return %c0_i32, %c0_i32_0 : i32, i32
  }
  func.func @transform_4(%arg0: i32) -> (i32, i32) {
    %c0_i32 = arith.constant 0 : i32
    %c0_i32_0 = arith.constant 0 : i32
    %c0_i32_1 = arith.constant 0 : i32
    return %c0_i32, %c0_i32_0 : i32, i32
  }
  func.func @transform_5(%arg0: i32) -> (i32, i32) {
    %c0_i32 = arith.constant 0 : i32
    %c0_i32_0 = arith.constant 0 : i32
    return %c0_i32, %arg0 : i32, i32
  }
}

</mosaic_0001>

<llo_original>
// kernel: dnn_forward.1
$region0: #{dnn_forward.1}
  #allocation0 [shape = 'u32[]', space=smem, size = 0x4, offset = 0x4, fixed_abs, tag = 'smem constant byte address 0x4 - core index']
  #allocation1 [shape = 'u32[144,128]{1,0:T(1,128)}', space=vmem, size = 0x12000, scoped, tag = 'internal scratch']
  %s0 = inlined_call_operand.vmem [shape: f32[200,16], index: 0, kind: input, shape index: {}]
  %s1 = inlined_call_operand.vmem [shape: f32[32,16], index: 1, kind: input, shape index: {}]
  %s2 = inlined_call_operand.vmem [shape: f32[32,1], index: 2, kind: input, shape index: {}]
  %s3 = inlined_call_operand.vmem [shape: f32[8,32], index: 3, kind: input, shape index: {}]
  %s4 = inlined_call_operand.vmem [shape: f32[8,1], index: 4, kind: input, shape index: {}]
  %s5 = inlined_call_operand.hbm [shape: f32[8,200], index: 5, kind: output, shape index: {}]
  %s6 = sld [smem:[#allocation0]]
  $region30: #{dnn_forward.1} parent=0
    _
  %s8 = ssub.s32 1, %s6
  %s9 = scalar_select 0, %s8, %s6
  $region1: #{dnn_forward.1} parent=0
    #allocation2 [shape = 'u8[8192]{0}', space=vmem, size = 0x2000, scoped, tag = 'output window, operand 0, single buffered']
    #allocation3 [shape = 's32[1]{0}', space=sflag, size = 0x4, scoped, tag = 'scoped memory for dnn_forward.1']
    %10 = vsyncpa [#allocation3], 0
    // Predicated region
    $region2: #{dnn_forward.1} parent=1 // pred_check
      _
    $region3: #{dnn_forward.1} parent=1 // pred_check_branch
      %12 = sbr.rel (0) target = $region5
    $region4: #{dnn_forward.1} parent=1 // pred_region
      _
    $region5: #{dnn_forward.1} parent=1 // pred_fallthru
      _
    // Predicated region
    $region6: #{dnn_forward.1} parent=1 // pred_check
      _
    $region7: #{dnn_forward.1} parent=1 // pred_check_branch
      %14 = sbr.rel (0) target = $region9
    $region8: #{dnn_forward.1} parent=1 // pred_region
      _
    $region9: #{dnn_forward.1} parent=1 // pred_fallthru
      _
    // Predicated region
    $region10: #{dnn_forward.1} parent=1 // pred_check
      _
    $region11: #{dnn_forward.1} parent=1 // pred_check_branch
      %16 = sbr.rel (0) target = $region13
    $region12: #{dnn_forward.1} parent=1 // pred_region
      _
    $region13: #{dnn_forward.1} parent=1 // pred_fallthru
      _
    // Predicated region
    $region14: #{dnn_forward.1} parent=1 // pred_check
      _
    $region15: #{dnn_forward.1} parent=1 // pred_check_branch
      %18 = sbr.rel (0) target = $region17
    $region16: #{dnn_forward.1} parent=1 // pred_region
      _
    $region17: #{dnn_forward.1} parent=1 // pred_fallthru
      _
    // Predicated region
    $region18: #{dnn_forward.1} parent=1 // pred_check
      _
    $region19: #{dnn_forward.1} parent=1 // pred_check_branch
      %20 = sbr.rel (0) target = $region21
    $region20: #{dnn_forward.1} parent=1 // pred_region
      _
    $region21: #{dnn_forward.1} parent=1 // pred_fallthru
      _
    %v21 = vld [vmem:[%s1] sm:$0xff]
    %v22 = vld [vmem:[%s1 + $0x8] sm:$0xff]
    %v23 = vld [vmem:[%s1 + $0x10] sm:$0xff]
    %v24 = vld [vmem:[%s1 + $0x18] sm:$0xff]
    %v25 = vld [vmem:[%s0] sm:$0xff]
    %v26 = vld [vmem:[%s0 + $0x8] sm:$0xff]
    %v27 = vld [vmem:[%s0 + $0x10] sm:$0xff]
    %v28 = vld [vmem:[%s0 + $0x18] sm:$0xff]
    %v29 = vld [vmem:[%s0 + $0x20] sm:$0xff]
    %v30 = vld [vmem:[%s0 + $0x28] sm:$0xff]
    %v31 = vld [vmem:[%s0 + $0x30] sm:$0xff]
    %v32 = vld [vmem:[%s0 + $0x38] sm:$0xff]
    %v33 = vld [vmem:[%s0 + $0x40] sm:$0xff]
    %v34 = vld [vmem:[%s0 + $0x48] sm:$0xff]
    %v35 = vld [vmem:[%s0 + $0x50] sm:$0xff]
    %v36 = vld [vmem:[%s0 + $0x58] sm:$0xff]
    %v37 = vld [vmem:[%s0 + $0x60] sm:$0xff]
    %v38 = vld [vmem:[%s0 + $0x68] sm:$0xff]
    %v39 = vld [vmem:[%s0 + $0x70] sm:$0xff]
    %v40 = vld [vmem:[%s0 + $0x78] sm:$0xff]
    %v41 = vld [vmem:[%s0 + $0x80] sm:$0xff]
    %v42 = vld [vmem:[%s0 + $0x88] sm:$0xff]
    %v43 = vld [vmem:[%s0 + $0x90] sm:$0xff]
    %v44 = vld [vmem:[%s0 + $0x98] sm:$0xff]
    %v45 = vld [vmem:[%s0 + $0xa0] sm:$0xff]
    %v46 = vld [vmem:[%s0 + $0xa8] sm:$0xff]
    %v47 = vld [vmem:[%s0 + $0xb0] sm:$0xff]
    %v48 = vld [vmem:[%s0 + $0xb8] sm:$0xff]
    %v49 = vld [vmem:[%s0 + $0xc0] sm:$0xff]
    %v50 = vld [vmem:[%s0 + $0xc8] sm:$0xff]
    %v51 = vld [vmem:[%s0 + $0xd0] sm:$0xff]
    %v52 = vld [vmem:[%s0 + $0xd8] sm:$0xff]
    %v53 = vld [vmem:[%s0 + $0xe0] sm:$0xff]
    %v54 = vld [vmem:[%s0 + $0xe8] sm:$0xff]
    %v55 = vld [vmem:[%s0 + $0xf0] sm:$0xff]
    %v56 = vld [vmem:[%s0 + $0xf8] sm:$0xff]
    %v57 = vld [vmem:[%s2] sm:$0xff]
    %v58 = vld [vmem:[%s2 + $0x8] sm:$0xff]
    %v59 = vld [vmem:[%s2 + $0x10] sm:$0xff]
    %v60 = vld [vmem:[%s2 + $0x18] sm:$0xff]
    %62 = vset.pattern.permute.xlu0 0
    %63 = vperm.xlu0 %62, %v57
    %v64 = vpop.permute.xlu0 %63
    %67 = vset.pattern.permute.xlu0 0
    %68 = vperm.xlu0 %67, %v58
    %v69 = vpop.permute.xlu0 %68
    %72 = vset.pattern.permute.xlu0 0
    %73 = vperm.xlu0 %72, %v59
    %v74 = vpop.permute.xlu0 %73
    %77 = vset.pattern.permute.xlu0 0
    %78 = vperm.xlu0 %77, %v60
    %v79 = vpop.permute.xlu0 %78
    %vm81 = vcmask 130048
    %v83 = vsel %vm81, %v21, 0
    %v86 = vsel %vm81, %v22, 0
    %v89 = vsel %vm81, %v23, 0
    %v92 = vsel %vm81, %v24, 0
    %v95 = vsel %vm81, %v25, 0
    %v98 = vsel %vm81, %v26, 0
    %v101 = vsel %vm81, %v27, 0
    %v104 = vsel %vm81, %v28, 0
    %v107 = vsel %vm81, %v29, 0
    %v110 = vsel %vm81, %v30, 0
    %v113 = vsel %vm81, %v31, 0
    %v116 = vsel %vm81, %v32, 0
    %v119 = vsel %vm81, %v33, 0
    %v122 = vsel %vm81, %v34, 0
    %v125 = vsel %vm81, %v35, 0
    %v128 = vsel %vm81, %v36, 0
    %v131 = vsel %vm81, %v37, 0
    %v134 = vsel %vm81, %v38, 0
    %v137 = vsel %vm81, %v39, 0
    %v140 = vsel %vm81, %v40, 0
    %v143 = vsel %vm81, %v41, 0
    %v146 = vsel %vm81, %v42, 0
    %v149 = vsel %vm81, %v43, 0
    %v152 = vsel %vm81, %v44, 0
    %v155 = vsel %vm81, %v45, 0
    %v158 = vsel %vm81, %v46, 0
    %v161 = vsel %vm81, %v47, 0
    %v164 = vsel %vm81, %v48, 0
    %v167 = vsel %vm81, %v49, 0
    %v170 = vsel %vm81, %v50, 0
    %v173 = vsel %vm81, %v51, 0
    %v176 = vsel %vm81, %v52, 0
    %v179 = vsel %vm81, %v53, 0
    %v182 = vsel %vm81, %v54, 0
    %v185 = vsel %vm81, %v55, 0
    %v188 = vsel %vm81, %v56, 0
    %190 = vmatprep.subr.mxu0 0.0
    %191 = vmatpush1.xpose.msra.mxu0 %v140
    %192 = vmatprep.subr.mxu0 0.0
    %193 = vmatpush1.xpose.msra.mxu0 %v137
    %194 = vmatprep.subr.mxu0 0.0
    %195 = vmatpush1.xpose.msra.mxu0 %v134
    %196 = vmatprep.subr.mxu0 0.0
    %197 = vmatpush1.xpose.msra.mxu0 %v131
    %198 = vmatprep.subr.mxu0 0.0
    %199 = vmatpush1.xpose.msra.mxu0 %v128
    %200 = vmatprep.subr.mxu0 0.0
    %201 = vmatpush1.xpose.msra.mxu0 %v125
    %202 = vmatprep.subr.mxu0 0.0
    %203 = vmatpush1.xpose.msra.mxu0 %v122
    %204 = vmatprep.subr.mxu0 0.0
    %205 = vmatpush1.xpose.msra.mxu0 %v119
    %206 = vmatprep.subr.mxu0 0.0
    %207 = vmatpush1.xpose.msra.mxu0 %v116
    %208 = vmatprep.subr.mxu0 0.0
    %209 = vmatpush1.xpose.msra.mxu0 %v113
    %210 = vmatprep.subr.mxu0 0.0
    %211 = vmatpush1.xpose.msra.mxu0 %v110
    %212 = vmatprep.subr.mxu0 0.0
    %213 = vmatpush1.xpose.msra.mxu0 %v107
    %214 = vmatprep.subr.mxu0 0.0
    %215 = vmatpush1.xpose.msra.mxu0 %v104
    %216 = vmatprep.subr.mxu0 0.0
    %217 = vmatpush1.xpose.msra.mxu0 %v101
    %218 = vmatprep.subr.mxu0 0.0
    %219 = vmatpush1.xpose.msra.mxu0 %v98
    %220 = vmatprep.subr.mxu0 0.0
    %221 = vmatpush1.xpose.msra.mxu0 %v95
    %222 = vmatprep.subr.mxu0 0.0
    %223 = vmatpush2.xpose.msra.mxu0 %v188
    %224 = vmatprep.subr.mxu0 0.0
    %225 = vmatpush2.xpose.msra.mxu0 %v185
    %226 = vmatprep.subr.mxu0 0.0
    %227 = vmatpush2.xpose.msra.mxu0 %v182
    %228 = vmatprep.subr.mxu0 0.0
    %229 = vmatpush2.xpose.msra.mxu0 %v179
    %230 = vmatprep.subr.mxu0 0.0
    %231 = vmatpush2.xpose.msra.mxu0 %v176
    %232 = vmatprep.subr.mxu0 0.0
    %233 = vmatpush2.xpose.msra.mxu0 %v173
    %234 = vmatprep.subr.mxu0 0.0
    %235 = vmatpush2.xpose.msra.mxu0 %v170
    %236 = vmatprep.subr.mxu0 0.0
    %237 = vmatpush2.xpose.msra.mxu0 %v167
    %238 = vmatprep.subr.mxu0 0.0
    %239 = vmatpush2.xpose.msra.mxu0 %v164
    %240 = vmatprep.subr.mxu0 0.0
    %241 = vmatpush2.xpose.msra.mxu0 %v161
    %242 = vmatprep.subr.mxu0 0.0
    %243 = vmatpush2.xpose.msra.mxu0 %v158
    %244 = vmatprep.subr.mxu0 0.0
    %245 = vmatpush2.xpose.msra.mxu0 %v155
    %246 = vmatprep.subr.mxu0 0.0
    %247 = vmatpush2.xpose.msra.mxu0 %v152
    %248 = vmatprep.subr.mxu0 0.0
    %249 = vmatpush2.xpose.msra.mxu0 %v149
    %250 = vmatprep.subr.mxu0 0.0
    %251 = vmatpush2.xpose.msra.mxu0 %v146
    %252 = vmatprep.subr.mxu0 0.0
    %253 = vmatpush2.xpose.msra.mxu0 %v143
    %254 = vmatprep.mubr.f32.mxu0 0.0
    %255 = vmatmul.mubr.f32.gmra.mxu0 %v83
    %v256 = vpop.f32.mrf.mxu0
    %v257 = vadd.f32 %v64, %v256
    %v258 = vpop.f32.mrf.mxu0
    %v259 = vadd.f32 %v64, %v258
    %260 = vmatprep.mubr.f32.mxu0 0.0
    %261 = vmatmul.mubr.f32.gmra.mxu0 %v86
    %v262 = vpop.f32.mrf.mxu0
    %v263 = vadd.f32 %v69, %v262
    %v264 = vpop.f32.mrf.mxu0
    %v265 = vadd.f32 %v69, %v264
    %266 = vmatprep.mubr.f32.mxu0 0.0
    %267 = vmatmul.mubr.f32.gmra.mxu0 %v89
    %v268 = vpop.f32.mrf.mxu0
    %v269 = vadd.f32 %v74, %v268
    %v270 = vpop.f32.mrf.mxu0
    %v271 = vadd.f32 %v74, %v270
    %272 = vmatprep.mubr.f32.mxu0 0.0
    %273 = vmatmul.mubr.f32.gmra.mxu0 %v92
    %v274 = vpop.f32.mrf.mxu0
    %v275 = vadd.f32 %v79, %v274
    %v276 = vpop.f32.mrf.mxu0
    %v277 = vadd.f32 %v79, %v276
    %278 = vdwg.mxu0
    %v279 = vmax.f32 %v257, 0.0
    %v280 = vmax.f32 %v259, 0.0
    %v281 = vmax.f32 %v263, 0.0
    %v282 = vmax.f32 %v265, 0.0
    %v283 = vmax.f32 %v269, 0.0
    %v284 = vmax.f32 %v271, 0.0
    %v285 = vmax.f32 %v275, 0.0
    %v286 = vmax.f32 %v277, 0.0
    %v287 = vld [vmem:[%s3] sm:$0xff]
    %v288 = vld [vmem:[%s4] sm:$0xff]
    %290 = vset.pattern.permute.xlu0 0
    %291 = vperm.xlu0 %290, %v288
    %v292 = vpop.permute.xlu0 %291
    %vm294 = vcmask 261120
    %v296 = vsel %vm294, %v287, 0
    %298 = vmatprep.subr.mxu0 0.0
    %299 = vmatpush1.msra.mxu0 0.0
    %300 = vmatprep.subr.mxu0 0.0
    %301 = vmatpush1.msra.mxu0 0.0
    %302 = vmatprep.subr.mxu0 0.0
    %303 = vmatpush1.msra.mxu0 0.0
    %304 = vmatprep.subr.mxu0 0.0
    %305 = vmatpush1.msra.mxu0 0.0
    %306 = vmatprep.subr.mxu0 0.0
    %307 = vmatpush1.msra.mxu0 0.0
    %308 = vmatprep.subr.mxu0 0.0
    %309 = vmatpush1.msra.mxu0 0.0
    %310 = vmatprep.subr.mxu0 0.0
    %311 = vmatpush1.msra.mxu0 0.0
    %312 = vmatprep.subr.mxu0 0.0
    %313 = vmatpush1.msra.mxu0 0.0
    %314 = vmatprep.subr.mxu0 0.0
    %315 = vmatpush1.msra.mxu0 0.0
    %316 = vmatprep.subr.mxu0 0.0
    %317 = vmatpush1.msra.mxu0 0.0
    %318 = vmatprep.subr.mxu0 0.0
    %319 = vmatpush1.msra.mxu0 0.0
    %320 = vmatprep.subr.mxu0 0.0
    %321 = vmatpush1.msra.mxu0 0.0
    %322 = vmatprep.subr.mxu0 %v286
    %323 = vmatpush1.msra.mxu0 %v285
    %324 = vmatprep.subr.mxu0 %v284
    %325 = vmatpush1.msra.mxu0 %v283
    %326 = vmatprep.subr.mxu0 %v282
    %327 = vmatpush1.msra.mxu0 %v281
    %328 = vmatprep.subr.mxu0 %v280
    %329 = vmatpush1.msra.mxu0 %v279
    %330 = vmatprep.subr.mxu0 0.0
    %331 = vmatpush2.msra.mxu0 0.0
    %332 = vmatprep.subr.mxu0 0.0
    %333 = vmatpush2.msra.mxu0 0.0
    %334 = vmatprep.subr.mxu0 0.0
    %335 = vmatpush2.msra.mxu0 0.0
    %336 = vmatprep.subr.mxu0 0.0
    %337 = vmatpush2.msra.mxu0 0.0
    %338 = vmatprep.subr.mxu0 0.0
    %339 = vmatpush2.msra.mxu0 0.0
    %340 = vmatprep.subr.mxu0 0.0
    %341 = vmatpush2.msra.mxu0 0.0
    %342 = vmatprep.subr.mxu0 0.0
    %343 = vmatpush2.msra.mxu0 0.0
    %344 = vmatprep.subr.mxu0 0.0
    %345 = vmatpush2.msra.mxu0 0.0
    %346 = vmatprep.subr.mxu0 0.0
    %347 = vmatpush2.msra.mxu0 0.0
    %348 = vmatprep.subr.mxu0 0.0
    %349 = vmatpush2.msra.mxu0 0.0
    %350 = vmatprep.subr.mxu0 0.0
    %351 = vmatpush2.msra.mxu0 0.0
    %352 = vmatprep.subr.mxu0 0.0
    %353 = vmatpush2.msra.mxu0 0.0
    %354 = vmatprep.subr.mxu0 0.0
    %355 = vmatpush2.msra.mxu0 0.0
    %356 = vmatprep.subr.mxu0 0.0
    %357 = vmatpush2.msra.mxu0 0.0
    %358 = vmatprep.subr.mxu0 0.0
    %359 = vmatpush2.msra.mxu0 0.0
    %360 = vmatprep.subr.mxu0 0.0
    %361 = vmatpush2.msra.mxu0 0.0
    %362 = vmatprep.mubr.f32.mxu0 0.0
    %363 = vmatmul.mubr.f32.gmra.mxu0 %v296
    %v364 = vpop.f32.mrf.mxu0
    %v365 = vadd.f32 %v292, %v364
    %v366 = vpop.f32.mrf.mxu0
    %v367 = vadd.f32 %v292, %v366
    %368 = vdwg.mxu0
    %v369 = vrot.slane %v365, 4
    %v370 = vmax.f32 %v365, %v369
    %v371 = vrot.slane %v370, 2
    %v372 = vmax.f32 %v370, %v371
    %v373 = vrot.slane %v372, 1
    %v374 = vmax.f32 %v372, %v373
    %v375 = vrot.slane %v367, 4
    %v376 = vmax.f32 %v367, %v375
    %v377 = vrot.slane %v376, 2
    %v378 = vmax.f32 %v376, %v377
    %v379 = vrot.slane %v378, 1
    %v380 = vmax.f32 %v378, %v379
    %v381 = vsub.f32 %v365, %v374
    %v382 = vsub.f32 %v367, %v380
    %v383 = vmul.f32 %v381, 1.442695
    %v384 = vpow.pop %v383
    %v385 = vmul.f32 %v382, 1.442695
    %v386 = vpow.pop %v385
    %v387 = vrot.slane %v384, 4
    %v388 = vadd.f32 %v384, %v387
    %v389 = vrot.slane %v388, 2
    %v390 = vadd.f32 %v388, %v389
    %v391 = vrot.slane %v390, 1
    %v392 = vadd.f32 %v390, %v391
    %v393 = vrot.slane %v386, 4
    %v394 = vadd.f32 %v386, %v393
    %v395 = vrot.slane %v394, 2
    %v396 = vadd.f32 %v394, %v395
    %v397 = vrot.slane %v396, 1
    %v398 = vadd.f32 %v396, %v397
    %v399 = vlog2.pop %v392
    %v400 = vmul.f32 %v399, 0.6931472
    %v401 = vlog2.pop %v398
    %v402 = vmul.f32 %v401, 0.6931472
    %v403 = vsub.f32 %v381, %v400
    %v404 = vsub.f32 %v382, %v402
    %405 = vst [vmem:[#allocation2] sm:$0xff] %v403
    %406 = vst [vmem:[#allocation2 + $0x8] sm:$0xff] %v404
    // Predicated region
    $region22: #{dnn_forward.1} parent=1 // pred_check
      _
    $region23: #{dnn_forward.1} parent=1 // pred_check_branch
      %408 = sbr.rel (0) target = $region25
    $region24: #{dnn_forward.1} parent=1 // pred_region
      %s410 = ssub.s32 256, 256
      %411 = vsyncadd [#allocation3], %s410
      %s413 = sshll.u32 [#allocation2], 4
      %s414 = int_to_ptr.vmem [resolvable:$true] %s413
      %416 = dma.vmem_to_hbm [thread:$0]  %s414, 256, %s5, [#allocation3]
    $region25: #{dnn_forward.1} parent=1 // pred_fallthru
      _
    // Predicated region
    $region26: #{dnn_forward.1} parent=1 // pred_check
      _
    $region27: #{dnn_forward.1} parent=1 // pred_check_branch
      %418 = sbr.rel (0) target = $region29
    $region28: #{dnn_forward.1} parent=1 // pred_region
      %419 = dma.done [#allocation3], 256
    $region29: #{dnn_forward.1} parent=1 // pred_fallthru
      _
    %420 = vsyncpa [#allocation3], 1

</llo_original>
